<compile_context>
chip_gen: v7x
topology: tpu7x:2x2x1
jax: 0.10.0
libtpu: 0.0.40
codegen_flags: <defaults>
</compile_context>

<pallas_src>
import numpy as np
import jax
import jax.numpy as jnp
from jax.experimental import pallas as pl
from jax.experimental.pallas import tpu as pltpu

NEG_SLOPE = 0.01   # F.leaky_relu default
BN_EPS = 1e-5      # nn.BatchNorm2d default

# Tap order k = dy*3 + dx, offsets (oy, ox) = (dy-1, dx-1).  Must match the weight reshape
# (c_out, dy, dx, c_in) -> (C, 9C) in the wrapper (tap-major, channel-minor columns).
_TAPS = tuple((dy - 1, dx - 1) for dy in range(3) for dx in range(3))


def _make_residual_block_kernel(N, H, W, C):
    M = N * H * W
    inv_m = 1.0 / M

    def kernel(x_ref, mask_ref, w1_ref, g1_ref, b1_ref, w2_ref, g2_ref, b2_ref,
               out_ref, patch_ref):
        """Fully fused, lane-dense residual block.

        x_ref     : (C, M)    activation, channels on sublanes, spatial N*H*W on lanes
        mask_ref  : (9, C, M) per-tap zero-padding border masks (0/1, host precomputed)
        w*_ref    : (C, 9C)   conv weights, columns ordered (dy, dx, c_in)
        g*/b*_ref : (C, 1)    BatchNorm affine params
        out_ref   : (C, M)
        patch_ref : (9C, M)   VMEM im2col slab, reused by both layers
        """
        xv = x_ref[...]                                   # (C, M), stays VMEM/vreg resident

        def conv_bn_lrelu(src, w_ref, g_ref, b_ref):
            # im2col: one XLU lane-roll + mask multiply per tap; 9 lane-dense slab writes.
            for k, (oy, ox) in enumerate(_TAPS):
                delta = oy * W + ox                       # flat spatial offset of this tap
                if delta == 0:
                    patch_ref[k * C:(k + 1) * C, :] = src
                else:
                    rolled = pltpu.roll(src, (-delta) % M, axis=1)   # rolled[m] = src[m+delta]
                    patch_ref[k * C:(k + 1) * C, :] = rolled * mask_ref[k]

            # Single MXU matmul, K = 9C, lane-dense (C, M) output, f32 accumulation.
            y = jnp.dot(w_ref[...], patch_ref[...], preferred_element_type=jnp.float32)

            # Training-mode BatchNorm: two-pass biased batch stats (lane-axis reductions).
            mean = jnp.sum(y, axis=1, keepdims=True) * inv_m           # (C, 1)
            centered = y - mean
            var = jnp.sum(centered * centered, axis=1, keepdims=True) * inv_m
            scale = g_ref[...] * jax.lax.rsqrt(var + BN_EPS)           # (C, 1)
            z = centered * scale + b_ref[...]

            return jnp.where(z > 0, z, NEG_SLOPE * z)                  # leaky_relu(0.01)

        out1 = conv_bn_lrelu(xv, w1_ref, g1_ref, b1_ref)
        out2 = conv_bn_lrelu(out1, w2_ref, g2_ref, b2_ref)
        out_ref[...] = out2 + xv                                       # residual add

    return kernel


def _make_tap_masks(N, H, W, C):
    """(9, C, M) float32: 1 where the shifted source pixel lies inside the image, else 0."""
    hh = np.arange(H).reshape(H, 1)
    ww = np.arange(W).reshape(1, W)
    masks = np.zeros((9, C, N * H * W), np.float32)
    for k, (oy, ox) in enumerate(_TAPS):
        valid = ((hh + oy >= 0) & (hh + oy < H) &
                 (ww + ox >= 0) & (ww + ox < W)).astype(np.float32)    # (H, W)
        flat = np.broadcast_to(valid[None], (N, H, W)).reshape(-1)     # (M,)
        masks[k] = flat[None, :]
    return masks


@jax.jit
def residual_block_nchw(x_nchw, w1_oihw, g1, b1, w2_oihw, g2, b2):
    """out = x + lrelu(bn2(conv2(lrelu(bn1(conv1(x)))))); NCHW in/out, OIHW weights."""
    N, C, H, W = x_nchw.shape
    M = N * H * W

    # Channel-major, spatial-on-lanes layout for the kernel.
    x_cm = jnp.transpose(x_nchw, (1, 0, 2, 3)).reshape(C, M)
    # OIHW (cout, cin, 3, 3) -> (cout, dy, dx, cin) -> (C, 9C): column order (dy, dx, cin)
    # matches the patch-slab row order (tap-major, channel-minor).
    w1_2d = jnp.transpose(w1_oihw, (0, 2, 3, 1)).reshape(C, 9 * C)
    w2_2d = jnp.transpose(w2_oihw, (0, 2, 3, 1)).reshape(C, 9 * C)
    g1c, b1c = g1.reshape(C, 1), b1.reshape(C, 1)
    g2c, b2c = g2.reshape(C, 1), b2.reshape(C, 1)
    masks = jnp.asarray(_make_tap_masks(N, H, W, C))      # trace-time constant input

    full2d = lambda i: (0, 0)
    out_cm = pl.pallas_call(
        _make_residual_block_kernel(N, H, W, C),
        out_shape=jax.ShapeDtypeStruct((C, M), jnp.float32),
        grid=(1,),
        in_specs=[
            pl.BlockSpec((C, M), full2d),                  # x (C, M)
            pl.BlockSpec((9, C, M), lambda i: (0, 0, 0)),  # tap border masks
            pl.BlockSpec((C, 9 * C), full2d),              # w1
            pl.BlockSpec((C, 1), full2d),                  # gamma1
            pl.BlockSpec((C, 1), full2d),                  # beta1
            pl.BlockSpec((C, 9 * C), full2d),              # w2
            pl.BlockSpec((C, 1), full2d),                  # gamma2
            pl.BlockSpec((C, 1), full2d),                  # beta2
        ],
        out_specs=pl.BlockSpec((C, M), full2d),
        scratch_shapes=[
            pltpu.VMEM((9 * C, M), jnp.float32),           # im2col slab (~80 KiB padded)
        ],
        compiler_params=pltpu.CompilerParams(
            dimension_semantics=("arbitrary",),
            vmem_limit_bytes=8 * 1024 * 1024,              # actual use ~0.5 MiB + headroom
        ),
    )(x_cm, masks, w1_2d, g1c, b1c, w2_2d, g2c, b2c)

    # TODO(synk): at larger N*H*W, add a row-band grid axis marked "parallel" (v7x 2 TCs)
    # with a two-pass BN (stats pass, normalize pass) instead of the single-block kernel.
    return jnp.transpose(out_cm.reshape(C, N, H, W), (1, 0, 2, 3))


def _ref_residual_block_nchw(x, w1, g1, b1, w2, g2, b2):
    """Pure-JAX (XLA) reference, PyTorch conventions (NCHW activations, OIHW weights)."""
    def block(inp, w, g, b):
        y = jax.lax.conv_general_dilated(
            inp, w, window_strides=(1, 1), padding="SAME",
            dimension_numbers=("NCHW", "OIHW", "NCHW"))
        mean = jnp.mean(y, axis=(0, 2, 3), keepdims=True)
        var = jnp.mean(jnp.square(y - mean), axis=(0, 2, 3), keepdims=True)
        yhat = (y - mean) * jax.lax.rsqrt(var + BN_EPS)
        yhat = yhat * g.reshape(1, -1, 1, 1) + b.reshape(1, -1, 1, 1)
        return jnp.where(yhat > 0, yhat, NEG_SLOPE * yhat)

    out1 = block(x, w1, g1, b1)
    return x + block(out1, w2, g2, b2)


if __name__ == "__main__":
    conv_dim, N, H, W = 4, 2, 16, 16
    key = jax.random.PRNGKey(0)
    k = jax.random.split(key, 7)

    # Input in PyTorch NCHW convention; conv weights in PyTorch OIHW convention (bias=False).
    x = jax.random.normal(k[0], (N, conv_dim, H, W), jnp.float32)
    w1 = 0.1 * jax.random.normal(k[1], (conv_dim, conv_dim, 3, 3), jnp.float32)
    w2 = 0.1 * jax.random.normal(k[2], (conv_dim, conv_dim, 3, 3), jnp.float32)
    # BatchNorm2d affine params.
    g1 = 1.0 + 0.1 * jax.random.normal(k[3], (conv_dim,), jnp.float32)
    b1 = 0.1 * jax.random.normal(k[4], (conv_dim,), jnp.float32)
    g2 = 1.0 + 0.1 * jax.random.normal(k[5], (conv_dim,), jnp.float32)
    b2 = 0.1 * jax.random.normal(k[6], (conv_dim,), jnp.float32)

    out = jax.block_until_ready(residual_block_nchw(x, w1, g1, b1, w2, g2, b2))
    assert out.shape == (N, conv_dim, H, W)

    ref = _ref_residual_block_nchw(x, w1, g1, b1, w2, g2, b2)
    # Tolerance covers possible default f32-precision differences (bf16-pass vs multi-pass)
    # between the Pallas MXU matmul and XLA's conv; structural errors (wrong tap/mask/weight
    # order, BN formula, residual) would be O(0.1) or larger.
    err = float(jnp.max(jnp.abs(out - ref)))
    assert jnp.allclose(out, ref, atol=5e-3, rtol=5e-3), f"max abs err = {err}"

    print("KERNEL_OK")
</pallas_src>

<mosaic_0001>
module attributes {stable_mosaic.version = 11 : i64} {
  func.func @kernel(%arg0: i32, %arg1: memref<4x512xf32, #tpu.memory_space<vmem>>, %arg2: memref<9x4x512xf32, #tpu.memory_space<vmem>>, %arg3: memref<4x36xf32, #tpu.memory_space<vmem>>, %arg4: memref<4x1xf32, #tpu.memory_space<vmem>>, %arg5: memref<4x1xf32, #tpu.memory_space<vmem>>, %arg6: memref<4x36xf32, #tpu.memory_space<vmem>>, %arg7: memref<4x1xf32, #tpu.memory_space<vmem>>, %arg8: memref<4x1xf32, #tpu.memory_space<vmem>>, %arg9: memref<4x512xf32, #tpu.memory_space<vmem>>, %arg10: memref<36x512xf32, #tpu.memory_space<vmem>>) attributes {dimension_semantics = [#tpu.dimension_semantics<arbitrary>], iteration_bounds = array<i64: 1>, scalar_prefetch = 0 : i64, scratch_operands = 1 : i64, tpu.core_type = #tpu.core_type<tc>, window_params = [{pipeline_mode = #tpu.pipeline_mode<synchronous>, transform_indices = @transform_0, window_bounds = array<i64: 4, 512>}, {pipeline_mode = #tpu.pipeline_mode<synchronous>, transform_indices = @transform_1, window_bounds = array<i64: 9, 4, 512>}, {pipeline_mode = #tpu.pipeline_mode<synchronous>, transform_indices = @transform_2, window_bounds = array<i64: 4, 36>}, {pipeline_mode = #tpu.pipeline_mode<synchronous>, transform_indices = @transform_3, window_bounds = array<i64: 4, 1>}, {pipeline_mode = #tpu.pipeline_mode<synchronous>, transform_indices = @transform_4, window_bounds = array<i64: 4, 1>}, {pipeline_mode = #tpu.pipeline_mode<synchronous>, transform_indices = @transform_5, window_bounds = array<i64: 4, 36>}, {pipeline_mode = #tpu.pipeline_mode<synchronous>, transform_indices = @transform_6, window_bounds = array<i64: 4, 1>}, {pipeline_mode = #tpu.pipeline_mode<synchronous>, transform_indices = @transform_7, window_bounds = array<i64: 4, 1>}, {pipeline_mode = #tpu.pipeline_mode<synchronous>, transform_indices = @transform_8, window_bounds = array<i64: 4, 512>}]} {
    %c0 = arith.constant 0 : index
    %c0_0 = arith.constant 0 : index
    %0 = vector.load %arg1[%c0, %c0_0] : memref<4x512xf32, #tpu.memory_space<vmem>>, vector<4x512xf32>
    %c17_i32 = arith.constant 17 : i32
    %1 = tpu.dynamic_rotate %0 by %c17_i32 dim 1 : vector<4x512xf32>, i32 -> vector<4x512xf32>
    %c0_1 = arith.constant 0 : index
    %c0_2 = arith.constant 0 : index
    %c0_3 = arith.constant 0 : index
    %2 = vector.load %arg2[%c0_1, %c0_2, %c0_3] : memref<9x4x512xf32, #tpu.memory_space<vmem>>, vector<1x4x512xf32>
    %3 = vector.shape_cast %2 : vector<1x4x512xf32> to vector<4x512xf32>
    %4 = arith.mulf %1, %3 : vector<4x512xf32>
    %c0_4 = arith.constant 0 : index
    %c0_5 = arith.constant 0 : index
    %5 = vector.load %arg10[%c0_4, %c0_5] : memref<36x512xf32, #tpu.memory_space<vmem>>, vector<4x512xf32>
    tpu.vector_store %arg10[%c0_4, %c0_5], %4 {strides = array<i32>} : memref<36x512xf32, #tpu.memory_space<vmem>>, vector<4x512xf32>,
    %c16_i32 = arith.constant 16 : i32
    %6 = tpu.dynamic_rotate %0 by %c16_i32 dim 1 : vector<4x512xf32>, i32 -> vector<4x512xf32>
    %c1 = arith.constant 1 : index
    %c0_6 = arith.constant 0 : index
    %c0_7 = arith.constant 0 : index
    %7 = vector.load %arg2[%c1, %c0_6, %c0_7] : memref<9x4x512xf32, #tpu.memory_space<vmem>>, vector<1x4x512xf32>
    %8 = vector.shape_cast %7 : vector<1x4x512xf32> to vector<4x512xf32>
    %9 = arith.mulf %6, %8 : vector<4x512xf32>
    %c4 = arith.constant 4 : index
    %c0_8 = arith.constant 0 : index
    %10 = vector.load %arg10[%c4, %c0_8] : memref<36x512xf32, #tpu.memory_space<vmem>>, vector<4x512xf32>
    tpu.vector_store %arg10[%c4, %c0_8], %9 {strides = array<i32>} : memref<36x512xf32, #tpu.memory_space<vmem>>, vector<4x512xf32>,
    %c15_i32 = arith.constant 15 : i32
    %11 = tpu.dynamic_rotate %0 by %c15_i32 dim 1 : vector<4x512xf32>, i32 -> vector<4x512xf32>
    %c2 = arith.constant 2 : index
    %c0_9 = arith.constant 0 : index
    %c0_10 = arith.constant 0 : index
    %12 = vector.load %arg2[%c2, %c0_9, %c0_10] : memref<9x4x512xf32, #tpu.memory_space<vmem>>, vector<1x4x512xf32>
    %13 = vector.shape_cast %12 : vector<1x4x512xf32> to vector<4x512xf32>
    %14 = arith.mulf %11, %13 : vector<4x512xf32>
    %c8 = arith.constant 8 : index
    %c0_11 = arith.constant 0 : index
    %15 = vector.load %arg10[%c8, %c0_11] : memref<36x512xf32, #tpu.memory_space<vmem>>, vector<4x512xf32>
    tpu.vector_store %arg10[%c8, %c0_11], %14 {strides = array<i32>} : memref<36x512xf32, #tpu.memory_space<vmem>>, vector<4x512xf32>,
    %c1_i32 = arith.constant 1 : i32
    %16 = tpu.dynamic_rotate %0 by %c1_i32 dim 1 : vector<4x512xf32>, i32 -> vector<4x512xf32>
    %c3 = arith.constant 3 : index
    %c0_12 = arith.constant 0 : index
    %c0_13 = arith.constant 0 : index
    %17 = vector.load %arg2[%c3, %c0_12, %c0_13] : memref<9x4x512xf32, #tpu.memory_space<vmem>>, vector<1x4x512xf32>
    %18 = vector.shape_cast %17 : vector<1x4x512xf32> to vector<4x512xf32>
    %19 = arith.mulf %16, %18 : vector<4x512xf32>
    %c12 = arith.constant 12 : index
    %c0_14 = arith.constant 0 : index
    %20 = vector.load %arg10[%c12, %c0_14] : memref<36x512xf32, #tpu.memory_space<vmem>>, vector<4x512xf32>
    tpu.vector_store %arg10[%c12, %c0_14], %19 {strides = array<i32>} : memref<36x512xf32, #tpu.memory_space<vmem>>, vector<4x512xf32>,
    %c16 = arith.constant 16 : index
    %c0_15 = arith.constant 0 : index
    %21 = vector.load %arg10[%c16, %c0_15] : memref<36x512xf32, #tpu.memory_space<vmem>>, vector<4x512xf32>
    tpu.vector_store %arg10[%c16, %c0_15], %0 {strides = array<i32>} : memref<36x512xf32, #tpu.memory_space<vmem>>, vector<4x512xf32>,
    %c511_i32 = arith.constant 511 : i32
    %22 = tpu.dynamic_rotate %0 by %c511_i32 dim 1 : vector<4x512xf32>, i32 -> vector<4x512xf32>
    %c5 = arith.constant 5 : index
    %c0_16 = arith.constant 0 : index
    %c0_17 = arith.constant 0 : index
    %23 = vector.load %arg2[%c5, %c0_16, %c0_17] : memref<9x4x512xf32, #tpu.memory_space<vmem>>, vector<1x4x512xf32>
    %24 = vector.shape_cast %23 : vector<1x4x512xf32> to vector<4x512xf32>
    %25 = arith.mulf %22, %24 : vector<4x512xf32>
    %c20 = arith.constant 20 : index
    %c0_18 = arith.constant 0 : index
    %26 = vector.load %arg10[%c20, %c0_18] : memref<36x512xf32, #tpu.memory_space<vmem>>, vector<4x512xf32>
    tpu.vector_store %arg10[%c20, %c0_18], %25 {strides = array<i32>} : memref<36x512xf32, #tpu.memory_space<vmem>>, vector<4x512xf32>,
    %c497_i32 = arith.constant 497 : i32
    %27 = tpu.dynamic_rotate %0 by %c497_i32 dim 1 : vector<4x512xf32>, i32 -> vector<4x512xf32>
    %c6 = arith.constant 6 : index
    %c0_19 = arith.constant 0 : index
    %c0_20 = arith.constant 0 : index
    %28 = vector.load %arg2[%c6, %c0_19, %c0_20] : memref<9x4x512xf32, #tpu.memory_space<vmem>>, vector<1x4x512xf32>
    %29 = vector.shape_cast %28 : vector<1x4x512xf32> to vector<4x512xf32>
    %30 = arith.mulf %27, %29 : vector<4x512xf32>
    %c24 = arith.constant 24 : index
    %c0_21 = arith.constant 0 : index
    %31 = vector.load %arg10[%c24, %c0_21] : memref<36x512xf32, #tpu.memory_space<vmem>>, vector<4x512xf32>
    tpu.vector_store %arg10[%c24, %c0_21], %30 {strides = array<i32>} : memref<36x512xf32, #tpu.memory_space<vmem>>, vector<4x512xf32>,
    %c496_i32 = arith.constant 496 : i32
    %32 = tpu.dynamic_rotate %0 by %c496_i32 dim 1 : vector<4x512xf32>, i32 -> vector<4x512xf32>
    %c7 = arith.constant 7 : index
    %c0_22 = arith.constant 0 : index
    %c0_23 = arith.constant 0 : index
    %33 = vector.load %arg2[%c7, %c0_22, %c0_23] : memref<9x4x512xf32, #tpu.memory_space<vmem>>, vector<1x4x512xf32>
    %34 = vector.shape_cast %33 : vector<1x4x512xf32> to vector<4x512xf32>
    %35 = arith.mulf %32, %34 : vector<4x512xf32>
    %c28 = arith.constant 28 : index
    %c0_24 = arith.constant 0 : index
    %36 = vector.load %arg10[%c28, %c0_24] : memref<36x512xf32, #tpu.memory_space<vmem>>, vector<4x512xf32>
    tpu.vector_store %arg10[%c28, %c0_24], %35 {strides = array<i32>} : memref<36x512xf32, #tpu.memory_space<vmem>>, vector<4x512xf32>,
    %c495_i32 = arith.constant 495 : i32
    %37 = tpu.dynamic_rotate %0 by %c495_i32 dim 1 : vector<4x512xf32>, i32 -> vector<4x512xf32>
    %c8_25 = arith.constant 8 : index
    %c0_26 = arith.constant 0 : index
    %c0_27 = arith.constant 0 : index
    %38 = vector.load %arg2[%c8_25, %c0_26, %c0_27] : memref<9x4x512xf32, #tpu.memory_space<vmem>>, vector<1x4x512xf32>
    %39 = vector.shape_cast %38 : vector<1x4x512xf32> to vector<4x512xf32>
    %40 = arith.mulf %37, %39 : vector<4x512xf32>
    %c32 = arith.constant 32 : index
    %c0_28 = arith.constant 0 : index
    %41 = vector.load %arg10[%c32, %c0_28] : memref<36x512xf32, #tpu.memory_space<vmem>>, vector<4x512xf32>
    tpu.vector_store %arg10[%c32, %c0_28], %40 {strides = array<i32>} : memref<36x512xf32, #tpu.memory_space<vmem>>, vector<4x512xf32>,
    %c0_29 = arith.constant 0 : index
    %c0_30 = arith.constant 0 : index
    %42 = vector.load %arg3[%c0_29, %c0_30] : memref<4x36xf32, #tpu.memory_space<vmem>>, vector<4x36xf32>
    %c0_31 = arith.constant 0 : index
    %c0_32 = arith.constant 0 : index
    %43 = vector.load %arg10[%c0_31, %c0_32] : memref<36x512xf32, #tpu.memory_space<vmem>>, vector<36x512xf32>
    %cst = arith.constant dense<0.000000e+00> : vector<4x512xf32>
    %44 = tpu.matmul %42, %43, %cst {dimension_numbers = #tpu.dot_dimension_numbers<[1], [0], [0], [1], [0, 0, 1, 1], [], []>} : vector<4x36xf32>, vector<36x512xf32>, vector<4x512xf32> -> vector<4x512xf32>
    %cst_33 = arith.constant dense<0.000000e+00> : vector<4xf32>
    %45 = vector.multi_reduction <add>, %44, %cst_33 [1] : vector<4x512xf32> to vector<4xf32>
    %46 = vector.shape_cast %45 : vector<4xf32> to vector<4x1xf32>
    %cst_34 = arith.constant 0.001953125 : f32
    %47 = vector.broadcast %cst_34 : f32 to vector<4x1xf32>
    %48 = arith.mulf %46, %47 : vector<4x1xf32>
    %49 = vector.broadcast %48 : vector<4x1xf32> to vector<4x512xf32>
    %50 = arith.subf %44, %49 : vector<4x512xf32>
    %51 = arith.mulf %50, %50 : vector<4x512xf32>
    %cst_35 = arith.constant dense<0.000000e+00> : vector<4xf32>
    %52 = vector.multi_reduction <add>, %51, %cst_35 [1] : vector<4x512xf32> to vector<4xf32>
    %53 = vector.shape_cast %52 : vector<4xf32> to vector<4x1xf32>
    %cst_36 = arith.constant 0.001953125 : f32
    %54 = vector.broadcast %cst_36 : f32 to vector<4x1xf32>
    %55 = arith.mulf %53, %54 : vector<4x1xf32>
    %c0_37 = arith.constant 0 : index
    %c0_38 = arith.constant 0 : index
    %56 = vector.load %arg4[%c0_37, %c0_38] : memref<4x1xf32, #tpu.memory_space<vmem>>, vector<4x1xf32>
    %cst_39 = arith.constant 9.99999974E-6 : f32
    %57 = vector.broadcast %cst_39 : f32 to vector<4x1xf32>
    %58 = arith.addf %55, %57 : vector<4x1xf32>
    %59 = math.rsqrt %58 : vector<4x1xf32>
    %60 = arith.mulf %56, %59 : vector<4x1xf32>
    %61 = vector.broadcast %60 : vector<4x1xf32> to vector<4x512xf32>
    %62 = arith.mulf %50, %61 : vector<4x512xf32>
    %c0_40 = arith.constant 0 : index
    %c0_41 = arith.constant 0 : index
    %63 = vector.load %arg5[%c0_40, %c0_41] : memref<4x1xf32, #tpu.memory_space<vmem>>, vector<4x1xf32>
    %64 = vector.broadcast %63 : vector<4x1xf32> to vector<4x512xf32>
    %65 = arith.addf %62, %64 : vector<4x512xf32>
    %cst_42 = arith.constant 0.000000e+00 : f32
    %66 = vector.broadcast %cst_42 : f32 to vector<4x512xf32>
    %67 = arith.cmpf ogt, %65, %66 : vector<4x512xf32>
    %cst_43 = arith.constant 0.00999999977 : f32
    %68 = vector.broadcast %cst_43 : f32 to vector<4x512xf32>
    %69 = arith.mulf %68, %65 : vector<4x512xf32>
    %70 = arith.select %67, %65, %69 : vector<4x512xi1>, vector<4x512xf32>
    %c17_i32_44 = arith.constant 17 : i32
    %71 = tpu.dynamic_rotate %70 by %c17_i32_44 dim 1 : vector<4x512xf32>, i32 -> vector<4x512xf32>
    %c0_45 = arith.constant 0 : index
    %c0_46 = arith.constant 0 : index
    %c0_47 = arith.constant 0 : index
    %72 = vector.load %arg2[%c0_45, %c0_46, %c0_47] : memref<9x4x512xf32, #tpu.memory_space<vmem>>, vector<1x4x512xf32>
    %73 = vector.shape_cast %72 : vector<1x4x512xf32> to vector<4x512xf32>
    %74 = arith.mulf %71, %73 : vector<4x512xf32>
    %c0_48 = arith.constant 0 : index
    %c0_49 = arith.constant 0 : index
    %75 = vector.load %arg10[%c0_48, %c0_49] : memref<36x512xf32, #tpu.memory_space<vmem>>, vector<4x512xf32>
    tpu.vector_store %arg10[%c0_48, %c0_49], %74 {strides = array<i32>} : memref<36x512xf32, #tpu.memory_space<vmem>>, vector<4x512xf32>,
    %c16_i32_50 = arith.constant 16 : i32
    %76 = tpu.dynamic_rotate %70 by %c16_i32_50 dim 1 : vector<4x512xf32>, i32 -> vector<4x512xf32>
    %c1_51 = arith.constant 1 : index
    %c0_52 = arith.constant 0 : index
    %c0_53 = arith.constant 0 : index
    %77 = vector.load %arg2[%c1_51, %c0_52, %c0_53] : memref<9x4x512xf32, #tpu.memory_space<vmem>>, vector<1x4x512xf32>
    %78 = vector.shape_cast %77 : vector<1x4x512xf32> to vector<4x512xf32>
    %79 = arith.mulf %76, %78 : vector<4x512xf32>
    %c4_54 = arith.constant 4 : index
    %c0_55 = arith.constant 0 : index
    %80 = vector.load %arg10[%c4_54, %c0_55] : memref<36x512xf32, #tpu.memory_space<vmem>>, vector<4x512xf32>
    tpu.vector_store %arg10[%c4_54, %c0_55], %79 {strides = array<i32>} : memref<36x512xf32, #tpu.memory_space<vmem>>, vector<4x512xf32>,
    %c15_i32_56 = arith.constant 15 : i32
    %81 = tpu.dynamic_rotate %70 by %c15_i32_56 dim 1 : vector<4x512xf32>, i32 -> vector<4x512xf32>
    %c2_57 = arith.constant 2 : index
    %c0_58 = arith.constant 0 : index
    %c0_59 = arith.constant 0 : index
    %82 = vector.load %arg2[%c2_57, %c0_58, %c0_59] : memref<9x4x512xf32, #tpu.memory_space<vmem>>, vector<1x4x512xf32>
    %83 = vector.shape_cast %82 : vector<1x4x512xf32> to vector<4x512xf32>
    %84 = arith.mulf %81, %83 : vector<4x512xf32>
    %c8_60 = arith.constant 8 : index
    %c0_61 = arith.constant 0 : index
    %85 = vector.load %arg10[%c8_60, %c0_61] : memref<36x512xf32, #tpu.memory_space<vmem>>, vector<4x512xf32>
    tpu.vector_store %arg10[%c8_60, %c0_61], %84 {strides = array<i32>} : memref<36x512xf32, #tpu.memory_space<vmem>>, vector<4x512xf32>,
    %c1_i32_62 = arith.constant 1 : i32
    %86 = tpu.dynamic_rotate %70 by %c1_i32_62 dim 1 : vector<4x512xf32>, i32 -> vector<4x512xf32>
    %c3_63 = arith.constant 3 : index
    %c0_64 = arith.constant 0 : index
    %c0_65 = arith.constant 0 : index
    %87 = vector.load %arg2[%c3_63, %c0_64, %c0_65] : memref<9x4x512xf32, #tpu.memory_space<vmem>>, vector<1x4x512xf32>
    %88 = vector.shape_cast %87 : vector<1x4x512xf32> to vector<4x512xf32>
    %89 = arith.mulf %86, %88 : vector<4x512xf32>
    %c12_66 = arith.constant 12 : index
    %c0_67 = arith.constant 0 : index
    %90 = vector.load %arg10[%c12_66, %c0_67] : memref<36x512xf32, #tpu.memory_space<vmem>>, vector<4x512xf32>
    tpu.vector_store %arg10[%c12_66, %c0_67], %89 {strides = array<i32>} : memref<36x512xf32, #tpu.memory_space<vmem>>, vector<4x512xf32>,
    %c16_68 = arith.constant 16 : index
    %c0_69 = arith.constant 0 : index
    %91 = vector.load %arg10[%c16_68, %c0_69] : memref<36x512xf32, #tpu.memory_space<vmem>>, vector<4x512xf32>
    tpu.vector_store %arg10[%c16_68, %c0_69], %70 {strides = array<i32>} : memref<36x512xf32, #tpu.memory_space<vmem>>, vector<4x512xf32>,
    %c511_i32_70 = arith.constant 511 : i32
    %92 = tpu.dynamic_rotate %70 by %c511_i32_70 dim 1 : vector<4x512xf32>, i32 -> vector<4x512xf32>
    %c5_71 = arith.constant 5 : index
    %c0_72 = arith.constant 0 : index
    %c0_73 = arith.constant 0 : index
    %93 = vector.load %arg2[%c5_71, %c0_72, %c0_73] : memref<9x4x512xf32, #tpu.memory_space<vmem>>, vector<1x4x512xf32>
    %94 = vector.shape_cast %93 : vector<1x4x512xf32> to vector<4x512xf32>
    %95 = arith.mulf %92, %94 : vector<4x512xf32>
    %c20_74 = arith.constant 20 : index
    %c0_75 = arith.constant 0 : index
    %96 = vector.load %arg10[%c20_74, %c0_75] : memref<36x512xf32, #tpu.memory_space<vmem>>, vector<4x512xf32>
    tpu.vector_store %arg10[%c20_74, %c0_75], %95 {strides = array<i32>} : memref<36x512xf32, #tpu.memory_space<vmem>>, vector<4x512xf32>,
    %c497_i32_76 = arith.constant 497 : i32
    %97 = tpu.dynamic_rotate %70 by %c497_i32_76 dim 1 : vector<4x512xf32>, i32 -> vector<4x512xf32>
    %c6_77 = arith.constant 6 : index
    %c0_78 = arith.constant 0 : index
    %c0_79 = arith.constant 0 : index
    %98 = vector.load %arg2[%c6_77, %c0_78, %c0_79] : memref<9x4x512xf32, #tpu.memory_space<vmem>>, vector<1x4x512xf32>
    %99 = vector.shape_cast %98 : vector<1x4x512xf32> to vector<4x512xf32>
    %100 = arith.mulf %97, %99 : vector<4x512xf32>
    %c24_80 = arith.constant 24 : index
    %c0_81 = arith.constant 0 : index
    %101 = vector.load %arg10[%c24_80, %c0_81] : memref<36x512xf32, #tpu.memory_space<vmem>>, vector<4x512xf32>
    tpu.vector_store %arg10[%c24_80, %c0_81], %100 {strides = array<i32>} : memref<36x512xf32, #tpu.memory_space<vmem>>, vector<4x512xf32>,
    %c496_i32_82 = arith.constant 496 : i32
    %102 = tpu.dynamic_rotate %70 by %c496_i32_82 dim 1 : vector<4x512xf32>, i32 -> vector<4x512xf32>
    %c7_83 = arith.constant 7 : index
    %c0_84 = arith.constant 0 : index
    %c0_85 = arith.constant 0 : index
    %103 = vector.load %arg2[%c7_83, %c0_84, %c0_85] : memref<9x4x512xf32, #tpu.memory_space<vmem>>, vector<1x4x512xf32>
    %104 = vector.shape_cast %103 : vector<1x4x512xf32> to vector<4x512xf32>
    %105 = arith.mulf %102, %104 : vector<4x512xf32>
    %c28_86 = arith.constant 28 : index
    %c0_87 = arith.constant 0 : index
    %106 = vector.load %arg10[%c28_86, %c0_87] : memref<36x512xf32, #tpu.memory_space<vmem>>, vector<4x512xf32>
    tpu.vector_store %arg10[%c28_86, %c0_87], %105 {strides = array<i32>} : memref<36x512xf32, #tpu.memory_space<vmem>>, vector<4x512xf32>,
    %c495_i32_88 = arith.constant 495 : i32
    %107 = tpu.dynamic_rotate %70 by %c495_i32_88 dim 1 : vector<4x512xf32>, i32 -> vector<4x512xf32>
    %c8_89 = arith.constant 8 : index
    %c0_90 = arith.constant 0 : index
    %c0_91 = arith.constant 0 : index
    %108 = vector.load %arg2[%c8_89, %c0_90, %c0_91] : memref<9x4x512xf32, #tpu.memory_space<vmem>>, vector<1x4x512xf32>
    %109 = vector.shape_cast %108 : vector<1x4x512xf32> to vector<4x512xf32>
    %110 = arith.mulf %107, %109 : vector<4x512xf32>
    %c32_92 = arith.constant 32 : index
    %c0_93 = arith.constant 0 : index
    %111 = vector.load %arg10[%c32_92, %c0_93] : memref<36x512xf32, #tpu.memory_space<vmem>>, vector<4x512xf32>
    tpu.vector_store %arg10[%c32_92, %c0_93], %110 {strides = array<i32>} : memref<36x512xf32, #tpu.memory_space<vmem>>, vector<4x512xf32>,
    %c0_94 = arith.constant 0 : index
    %c0_95 = arith.constant 0 : index
    %112 = vector.load %arg6[%c0_94, %c0_95] : memref<4x36xf32, #tpu.memory_space<vmem>>, vector<4x36xf32>
    %c0_96 = arith.constant 0 : index
    %c0_97 = arith.constant 0 : index
    %113 = vector.load %arg10[%c0_96, %c0_97] : memref<36x512xf32, #tpu.memory_space<vmem>>, vector<36x512xf32>
    %cst_98 = arith.constant dense<0.000000e+00> : vector<4x512xf32>
    %114 = tpu.matmul %112, %113, %cst_98 {dimension_numbers = #tpu.dot_dimension_numbers<[1], [0], [0], [1], [0, 0, 1, 1], [], []>} : vector<4x36xf32>, vector<36x512xf32>, vector<4x512xf32> -> vector<4x512xf32>
    %cst_99 = arith.constant dense<0.000000e+00> : vector<4xf32>
    %115 = vector.multi_reduction <add>, %114, %cst_99 [1] : vector<4x512xf32> to vector<4xf32>
    %116 = vector.shape_cast %115 : vector<4xf32> to vector<4x1xf32>
    %cst_100 = arith.constant 0.001953125 : f32
    %117 = vector.broadcast %cst_100 : f32 to vector<4x1xf32>
    %118 = arith.mulf %116, %117 : vector<4x1xf32>
    %119 = vector.broadcast %118 : vector<4x1xf32> to vector<4x512xf32>
    %120 = arith.subf %114, %119 : vector<4x512xf32>
    %121 = arith.mulf %120, %120 : vector<4x512xf32>
    %cst_101 = arith.constant dense<0.000000e+00> : vector<4xf32>
    %122 = vector.multi_reduction <add>, %121, %cst_101 [1] : vector<4x512xf32> to vector<4xf32>
    %123 = vector.shape_cast %122 : vector<4xf32> to vector<4x1xf32>
    %cst_102 = arith.constant 0.001953125 : f32
    %124 = vector.broadcast %cst_102 : f32 to vector<4x1xf32>
    %125 = arith.mulf %123, %124 : vector<4x1xf32>
    %c0_103 = arith.constant 0 : index
    %c0_104 = arith.constant 0 : index
    %126 = vector.load %arg7[%c0_103, %c0_104] : memref<4x1xf32, #tpu.memory_space<vmem>>, vector<4x1xf32>
    %cst_105 = arith.constant 9.99999974E-6 : f32
    %127 = vector.broadcast %cst_105 : f32 to vector<4x1xf32>
    %128 = arith.addf %125, %127 : vector<4x1xf32>
    %129 = math.rsqrt %128 : vector<4x1xf32>
    %130 = arith.mulf %126, %129 : vector<4x1xf32>
    %131 = vector.broadcast %130 : vector<4x1xf32> to vector<4x512xf32>
    %132 = arith.mulf %120, %131 : vector<4x512xf32>
    %c0_106 = arith.constant 0 : index
    %c0_107 = arith.constant 0 : index
    %133 = vector.load %arg8[%c0_106, %c0_107] : memref<4x1xf32, #tpu.memory_space<vmem>>, vector<4x1xf32>
    %134 = vector.broadcast %133 : vector<4x1xf32> to vector<4x512xf32>
    %135 = arith.addf %132, %134 : vector<4x512xf32>
    %cst_108 = arith.constant 0.000000e+00 : f32
    %136 = vector.broadcast %cst_108 : f32 to vector<4x512xf32>
    %137 = arith.cmpf ogt, %135, %136 : vector<4x512xf32>
    %cst_109 = arith.constant 0.00999999977 : f32
    %138 = vector.broadcast %cst_109 : f32 to vector<4x512xf32>
    %139 = arith.mulf %138, %135 : vector<4x512xf32>
    %140 = arith.select %137, %135, %139 : vector<4x512xi1>, vector<4x512xf32>
    %141 = arith.addf %140, %0 : vector<4x512xf32>
    %c0_110 = arith.constant 0 : index
    %c0_111 = arith.constant 0 : index
    %142 = vector.load %arg9[%c0_110, %c0_111] : memref<4x512xf32, #tpu.memory_space<vmem>>, vector<4x512xf32>
    tpu.vector_store %arg9[%c0_110, %c0_111], %141 {strides = array<i32>} : memref<4x512xf32, #tpu.memory_space<vmem>>, vector<4x512xf32>,
    return
  }
  func.func @transform_0(%arg0: i32) -> (i32, i32) {
    %c0_i32 = arith.constant 0 : i32
    %c0_i32_0 = arith.constant 0 : i32
    %c0_i32_1 = arith.constant 0 : i32
    return %c0_i32, %c0_i32_0 : i32, i32
  }
  func.func @transform_1(%arg0: i32) -> (i32, i32, i32) {
    %c0_i32 = arith.constant 0 : i32
    %c0_i32_0 = arith.constant 0 : i32
    %c0_i32_1 = arith.constant 0 : i32
    %c0_i32_2 = arith.constant 0 : i32
    return %c0_i32, %c0_i32_0, %c0_i32_1 : i32, i32, i32
  }
  func.func @transform_2(%arg0: i32) -> (i32, i32) {
    %c0_i32 = arith.constant 0 : i32
    %c0_i32_0 = arith.constant 0 : i32
    %c0_i32_1 = arith.constant 0 : i32
    return %c0_i32, %c0_i32_0 : i32, i32
  }
  func.func @transform_3(%arg0: i32) -> (i32, i32) {
    %c0_i32 = arith.constant 0 : i32
    %c0_i32_0 = arith.constant 0 : i32
    %c0_i32_1 = arith.constant 0 : i32
    return %c0_i32, %c0_i32_0 : i32, i32
  }
  func.func @transform_4(%arg0: i32) -> (i32, i32) {
    %c0_i32 = arith.constant 0 : i32
    %c0_i32_0 = arith.constant 0 : i32
    %c0_i32_1 = arith.constant 0 : i32
    return %c0_i32, %c0_i32_0 : i32, i32
  }
  func.func @transform_5(%arg0: i32) -> (i32, i32) {
    %c0_i32 = arith.constant 0 : i32
    %c0_i32_0 = arith.constant 0 : i32
    %c0_i32_1 = arith.constant 0 : i32
    return %c0_i32, %c0_i32_0 : i32, i32
  }
  func.func @transform_6(%arg0: i32) -> (i32, i32) {
    %c0_i32 = arith.constant 0 : i32
    %c0_i32_0 = arith.constant 0 : i32
    %c0_i32_1 = arith.constant 0 : i32
    return %c0_i32, %c0_i32_0 : i32, i32
  }
  func.func @transform_7(%arg0: i32) -> (i32, i32) {
    %c0_i32 = arith.constant 0 : i32
    %c0_i32_0 = arith.constant 0 : i32
    %c0_i32_1 = arith.constant 0 : i32
    return %c0_i32, %c0_i32_0 : i32, i32
  }
  func.func @transform_8(%arg0: i32) -> (i32, i32) {
    %c0_i32 = arith.constant 0 : i32
    %c0_i32_0 = arith.constant 0 : i32
    %c0_i32_1 = arith.constant 0 : i32
    return %c0_i32, %c0_i32_0 : i32, i32
  }
}

</mosaic_0001>

<llo_original>
// kernel: residual_block_nchw.1
$region0: #{residual_block_nchw.1}
  #allocation0 [shape = 'u32[]', space=smem, size = 0x4, offset = 0x4, fixed_abs, tag = 'smem constant byte address 0x4 - core index']
  #allocation1 [shape = 'u32[144,128]{1,0:T(1,128)}', space=vmem, size = 0x12000, scoped, tag = 'internal scratch']
  #allocation2 [shape = 'f32[36,512]{1,0:T(8,128)}', space=vmem, size = 0x14000, scoped, tag = 'scratch operand']
  %s0 = inlined_call_operand.vmem [shape: f32[4,512], index: 0, kind: input, shape index: {}]
  %s1 = inlined_call_operand.vmem [shape: f32[9,4,512], index: 1, kind: input, shape index: {}]
  %s2 = inlined_call_operand.vmem [shape: f32[4,36], index: 2, kind: input, shape index: {}]
  %s3 = inlined_call_operand.vmem [shape: f32[4,1], index: 3, kind: input, shape index: {}]
  %s4 = inlined_call_operand.vmem [shape: f32[4,1], index: 4, kind: input, shape index: {}]
  %s5 = inlined_call_operand.vmem [shape: f32[4,36], index: 5, kind: input, shape index: {}]
  %s6 = inlined_call_operand.vmem [shape: f32[4,1], index: 6, kind: input, shape index: {}]
  %s7 = inlined_call_operand.vmem [shape: f32[4,1], index: 7, kind: input, shape index: {}]
  %s8 = inlined_call_operand.vmem [shape: f32[4,512], index: 8, kind: output, shape index: {}]
  %s9 = sld [smem:[#allocation0]]
  $region42: #{residual_block_nchw.1} parent=0
    _
  %s11 = ssub.s32 1, %s9
  %s12 = scalar_select 0, %s11, %s9
  // Predicated region
  $region2: #{residual_block_nchw.1} parent=0 // pred_check
    _
  $region3: #{residual_block_nchw.1} parent=0 // pred_check_branch
    %14 = sbr.rel (0) target = $region5
  $region4: #{residual_block_nchw.1} parent=0 // pred_region
    _
  $region5: #{residual_block_nchw.1} parent=0 // pred_fallthru
    _
  // Predicated region
  $region6: #{residual_block_nchw.1} parent=0 // pred_check
    _
  $region7: #{residual_block_nchw.1} parent=0 // pred_check_branch
    %16 = sbr.rel (0) target = $region9
  $region8: #{residual_block_nchw.1} parent=0 // pred_region
    _
  $region9: #{residual_block_nchw.1} parent=0 // pred_fallthru
    _
  // Predicated region
  $region10: #{residual_block_nchw.1} parent=0 // pred_check
    _
  $region11: #{residual_block_nchw.1} parent=0 // pred_check_branch
    %18 = sbr.rel (0) target = $region13
  $region12: #{residual_block_nchw.1} parent=0 // pred_region
    _
  $region13: #{residual_block_nchw.1} parent=0 // pred_fallthru
    _
  // Predicated region
  $region14: #{residual_block_nchw.1} parent=0 // pred_check
    _
  $region15: #{residual_block_nchw.1} parent=0 // pred_check_branch
    %20 = sbr.rel (0) target = $region17
  $region16: #{residual_block_nchw.1} parent=0 // pred_region
    _
  $region17: #{residual_block_nchw.1} parent=0 // pred_fallthru
    _
  // Predicated region
  $region18: #{residual_block_nchw.1} parent=0 // pred_check
    _
  $region19: #{residual_block_nchw.1} parent=0 // pred_check_branch
    %22 = sbr.rel (0) target = $region21
  $region20: #{residual_block_nchw.1} parent=0 // pred_region
    _
  $region21: #{residual_block_nchw.1} parent=0 // pred_fallthru
    _
  // Predicated region
  $region22: #{residual_block_nchw.1} parent=0 // pred_check
    _
  $region23: #{residual_block_nchw.1} parent=0 // pred_check_branch
    %24 = sbr.rel (0) target = $region25
  $region24: #{residual_block_nchw.1} parent=0 // pred_region
    _
  $region25: #{residual_block_nchw.1} parent=0 // pred_fallthru
    _
  // Predicated region
  $region26: #{residual_block_nchw.1} parent=0 // pred_check
    _
  $region27: #{residual_block_nchw.1} parent=0 // pred_check_branch
    %26 = sbr.rel (0) target = $region29
  $region28: #{residual_block_nchw.1} parent=0 // pred_region
    _
  $region29: #{residual_block_nchw.1} parent=0 // pred_fallthru
    _
  // Predicated region
  $region30: #{residual_block_nchw.1} parent=0 // pred_check
    _
  $region31: #{residual_block_nchw.1} parent=0 // pred_check_branch
    %28 = sbr.rel (0) target = $region33
  $region32: #{residual_block_nchw.1} parent=0 // pred_region
    _
  $region33: #{residual_block_nchw.1} parent=0 // pred_fallthru
    _
  %v29 = vld [vmem:[%s0] sm:$0xff]
  %v30 = vld [vmem:[%s0 + $0x8] sm:$0xff]
  %v33 = vcombine.high %v29, %v29
  %v34 = vcombine.high %v30, %v30
  %37 = vrot.lane.b32.xlu0 %v29, 17
  %v38 = vpop.permute.xlu0 %37
  %39 = vrot.lane.b32.xlu0 %v33, 17
  %v40 = vpop.permute.xlu0 %39
  %41 = vrot.lane.b32.xlu0 %v30, 17
  %v42 = vpop.permute.xlu0 %41
  %43 = vrot.lane.b32.xlu0 %v34, 17
  %v44 = vpop.permute.xlu0 %43
  %v45 = vlaneseq
  %v46 = vand.u32 %v45, 127
  %vm47 = vcmp.lt.s32.totalorder %v46, 17
  %v48 = vsel %vm47, %v42, %v44
  %v49 = vsel %vm47, %v40, %v42
  %v50 = vsel %vm47, %v38, %v40
  %v51 = vsel %vm47, %v44, %v38
  %v52 = vld [vmem:[%s1] sm:$0xff]
  %v53 = vld [vmem:[%s1 + $0x8] sm:$0xff]
  %v56 = vcombine.high %v52, %v52
  %v57 = vcombine.high %v53, %v53
  %v60 = vmul.f32 %v51, %v52
  %v61 = vmul.f32 %v50, %v56
  %v62 = vmul.f32 %v49, %v53
  %v63 = vmul.f32 %v48, %v57
  %64 = vst [vmem:[#allocation2] sm:$0xf] %v60
  %65 = vst [vmem:[#allocation2 + $0x8] sm:$0xf] %v61
  %66 = vst [vmem:[#allocation2 + $0x10] sm:$0xf] %v62
  %67 = vst [vmem:[#allocation2 + $0x18] sm:$0xf] %v63
  %68 = vrot.lane.b32.xlu0 %v29, 16
  %v69 = vpop.permute.xlu0 %68
  %70 = vrot.lane.b32.xlu0 %v33, 16
  %v71 = vpop.permute.xlu0 %70
  %72 = vrot.lane.b32.xlu0 %v30, 16
  %v73 = vpop.permute.xlu0 %72
  %74 = vrot.lane.b32.xlu0 %v34, 16
  %v75 = vpop.permute.xlu0 %74
  %vm76 = vcmp.lt.s32.totalorder %v46, 16
  %v77 = vsel %vm76, %v73, %v75
  %v78 = vsel %vm76, %v71, %v73
  %v79 = vsel %vm76, %v69, %v71
  %v80 = vsel %vm76, %v75, %v69
  %s81 = scalar_lea.vmem %s1, 16
  %v82 = vld [vmem:[%s81] sm:$0xff]
  %v83 = vld [vmem:[%s81 + $0x8] sm:$0xff]
  %v86 = vcombine.high %v82, %v82
  %v87 = vcombine.high %v83, %v83
  %v90 = vmul.f32 %v80, %v82
  %v91 = vmul.f32 %v79, %v86
  %v92 = vmul.f32 %v78, %v83
  %v93 = vmul.f32 %v77, %v87
  %v98 = vrot.slane %v90, 4
  %v99 = vrot.slane %v91, 4
  %v100 = vrot.slane %v92, 4
  %v101 = vrot.slane %v93, 4
  %106 = vst [vmem:[#allocation2] sm:$0xf0] %v98
  %107 = vst [vmem:[#allocation2 + $0x8] sm:$0xf0] %v99
  %108 = vst [vmem:[#allocation2 + $0x10] sm:$0xf0] %v100
  %109 = vst [vmem:[#allocation2 + $0x18] sm:$0xf0] %v101
  %110 = vrot.lane.b32.xlu0 %v29, 15
  %v111 = vpop.permute.xlu0 %110
  %112 = vrot.lane.b32.xlu0 %v33, 15
  %v113 = vpop.permute.xlu0 %112
  %114 = vrot.lane.b32.xlu0 %v30, 15
  %v115 = vpop.permute.xlu0 %114
  %116 = vrot.lane.b32.xlu0 %v34, 15
  %v117 = vpop.permute.xlu0 %116
  %vm118 = vcmp.lt.s32.totalorder %v46, 15
  %v119 = vsel %vm118, %v115, %v117
  %v120 = vsel %vm118, %v113, %v115
  %v121 = vsel %vm118, %v111, %v113
  %v122 = vsel %vm118, %v117, %v111
  %s123 = scalar_lea.vmem %s1, 32
  %v124 = vld [vmem:[%s123] sm:$0xff]
  %v125 = vld [vmem:[%s123 + $0x8] sm:$0xff]
  %v128 = vcombine.high %v124, %v124
  %v129 = vcombine.high %v125, %v125
  %v132 = vmul.f32 %v122, %v124
  %v133 = vmul.f32 %v121, %v128
  %v134 = vmul.f32 %v120, %v125
  %v135 = vmul.f32 %v119, %v129
  %136 = vst [vmem:[#allocation2 + $0x20] sm:$0xf] %v132
  %137 = vst [vmem:[#allocation2 + $0x28] sm:$0xf] %v133
  %138 = vst [vmem:[#allocation2 + $0x30] sm:$0xf] %v134
  %139 = vst [vmem:[#allocation2 + $0x38] sm:$0xf] %v135
  %140 = vrot.lane.b32.xlu0 %v29, 1
  %v141 = vpop.permute.xlu0 %140
  %142 = vrot.lane.b32.xlu0 %v33, 1
  %v143 = vpop.permute.xlu0 %142
  %144 = vrot.lane.b32.xlu0 %v30, 1
  %v145 = vpop.permute.xlu0 %144
  %146 = vrot.lane.b32.xlu0 %v34, 1
  %v147 = vpop.permute.xlu0 %146
  %vm148 = vcmp.lt.s32.totalorder %v46, 1
  %v149 = vsel %vm148, %v145, %v147
  %v150 = vsel %vm148, %v143, %v145
  %v151 = vsel %vm148, %v141, %v143
  %v152 = vsel %vm148, %v147, %v141
  %s153 = scalar_lea.vmem %s1, 48
  %v154 = vld [vmem:[%s153] sm:$0xff]
  %v155 = vld [vmem:[%s153 + $0x8] sm:$0xff]
  %v158 = vcombine.high %v154, %v154
  %v159 = vcombine.high %v155, %v155
  %v162 = vmul.f32 %v152, %v154
  %v163 = vmul.f32 %v151, %v158
  %v164 = vmul.f32 %v150, %v155
  %v165 = vmul.f32 %v149, %v159
  %v170 = vrot.slane %v162, 4
  %v171 = vrot.slane %v163, 4
  %v172 = vrot.slane %v164, 4
  %v173 = vrot.slane %v165, 4
  %178 = vst [vmem:[#allocation2 + $0x20] sm:$0xf0] %v170
  %179 = vst [vmem:[#allocation2 + $0x28] sm:$0xf0] %v171
  %180 = vst [vmem:[#allocation2 + $0x30] sm:$0xf0] %v172
  %181 = vst [vmem:[#allocation2 + $0x38] sm:$0xf0] %v173
  %182 = vst [vmem:[#allocation2 + $0x40] sm:$0xf] %v29
  %183 = vst [vmem:[#allocation2 + $0x48] sm:$0xf] %v33
  %184 = vst [vmem:[#allocation2 + $0x50] sm:$0xf] %v30
  %185 = vst [vmem:[#allocation2 + $0x58] sm:$0xf] %v34
  %186 = vrot.lane.b32.xlu0 %v29, 127
  %v187 = vpop.permute.xlu0 %186
  %188 = vrot.lane.b32.xlu0 %v33, 127
  %v189 = vpop.permute.xlu0 %188
  %190 = vrot.lane.b32.xlu0 %v30, 127
  %v191 = vpop.permute.xlu0 %190
  %192 = vrot.lane.b32.xlu0 %v34, 127
  %v193 = vpop.permute.xlu0 %192
  %vm194 = vcmp.lt.s32.totalorder %v46, 127
  %v195 = vsel %vm194, %v191, %v193
  %v196 = vsel %vm194, %v189, %v191
  %v197 = vsel %vm194, %v187, %v189
  %v198 = vsel %vm194, %v193, %v187
  %s199 = scalar_lea.vmem %s1, 80
  %v200 = vld [vmem:[%s199] sm:$0xff]
  %v201 = vld [vmem:[%s199 + $0x8] sm:$0xff]
  %v204 = vcombine.high %v200, %v200
  %v205 = vcombine.high %v201, %v201
  %v208 = vmul.f32 %v197, %v200
  %v209 = vmul.f32 %v196, %v204
  %v210 = vmul.f32 %v195, %v201
  %v211 = vmul.f32 %v198, %v205
  %v216 = vrot.slane %v208, 4
  %v217 = vrot.slane %v209, 4
  %v218 = vrot.slane %v210, 4
  %v219 = vrot.slane %v211, 4
  %224 = vst [vmem:[#allocation2 + $0x40] sm:$0xf0] %v216
  %225 = vst [vmem:[#allocation2 + $0x48] sm:$0xf0] %v217
  %226 = vst [vmem:[#allocation2 + $0x50] sm:$0xf0] %v218
  %227 = vst [vmem:[#allocation2 + $0x58] sm:$0xf0] %v219
  %228 = vrot.lane.b32.xlu0 %v29, 113
  %v229 = vpop.permute.xlu0 %228
  %230 = vrot.lane.b32.xlu0 %v33, 113
  %v231 = vpop.permute.xlu0 %230
  %232 = vrot.lane.b32.xlu0 %v30, 113
  %v233 = vpop.permute.xlu0 %232
  %234 = vrot.lane.b32.xlu0 %v34, 113
  %v235 = vpop.permute.xlu0 %234
  %vm236 = vcmp.lt.s32.totalorder %v46, 113
  %v237 = vsel %vm236, %v233, %v235
  %v238 = vsel %vm236, %v231, %v233
  %v239 = vsel %vm236, %v229, %v231
  %v240 = vsel %vm236, %v235, %v229
  %s241 = scalar_lea.vmem %s1, 96
  %v242 = vld [vmem:[%s241] sm:$0xff]
  %v243 = vld [vmem:[%s241 + $0x8] sm:$0xff]
  %v246 = vcombine.high %v242, %v242
  %v247 = vcombine.high %v243, %v243
  %v250 = vmul.f32 %v239, %v242
  %v251 = vmul.f32 %v238, %v246
  %v252 = vmul.f32 %v237, %v243
  %v253 = vmul.f32 %v240, %v247
  %254 = vst [vmem:[#allocation2 + $0x60] sm:$0xf] %v250
  %255 = vst [vmem:[#allocation2 + $0x68] sm:$0xf] %v251
  %256 = vst [vmem:[#allocation2 + $0x70] sm:$0xf] %v252
  %257 = vst [vmem:[#allocation2 + $0x78] sm:$0xf] %v253
  %258 = vrot.lane.b32.xlu0 %v29, 112
  %v259 = vpop.permute.xlu0 %258
  %260 = vrot.lane.b32.xlu0 %v33, 112
  %v261 = vpop.permute.xlu0 %260
  %262 = vrot.lane.b32.xlu0 %v30, 112
  %v263 = vpop.permute.xlu0 %262
  %264 = vrot.lane.b32.xlu0 %v34, 112
  %v265 = vpop.permute.xlu0 %264
  %vm266 = vcmp.lt.s32.totalorder %v46, 112
  %v267 = vsel %vm266, %v263, %v265
  %v268 = vsel %vm266, %v261, %v263
  %v269 = vsel %vm266, %v259, %v261
  %v270 = vsel %vm266, %v265, %v259
  %s271 = scalar_lea.vmem %s1, 112
  %v272 = vld [vmem:[%s271] sm:$0xff]
  %v273 = vld [vmem:[%s271 + $0x8] sm:$0xff]
  %v276 = vcombine.high %v272, %v272
  %v277 = vcombine.high %v273, %v273
  %v280 = vmul.f32 %v269, %v272
  %v281 = vmul.f32 %v268, %v276
  %v282 = vmul.f32 %v267, %v273
  %v283 = vmul.f32 %v270, %v277
  %v288 = vrot.slane %v280, 4
  %v289 = vrot.slane %v281, 4
  %v290 = vrot.slane %v282, 4
  %v291 = vrot.slane %v283, 4
  %296 = vst [vmem:[#allocation2 + $0x60] sm:$0xf0] %v288
  %297 = vst [vmem:[#allocation2 + $0x68] sm:$0xf0] %v289
  %298 = vst [vmem:[#allocation2 + $0x70] sm:$0xf0] %v290
  %299 = vst [vmem:[#allocation2 + $0x78] sm:$0xf0] %v291
  %300 = vrot.lane.b32.xlu0 %v29, 111
  %v301 = vpop.permute.xlu0 %300
  %302 = vrot.lane.b32.xlu0 %v33, 111
  %v303 = vpop.permute.xlu0 %302
  %304 = vrot.lane.b32.xlu0 %v30, 111
  %v305 = vpop.permute.xlu0 %304
  %306 = vrot.lane.b32.xlu0 %v34, 111
  %v307 = vpop.permute.xlu0 %306
  %vm308 = vcmp.lt.s32.totalorder %v46, 111
  %v309 = vsel %vm308, %v305, %v307
  %v310 = vsel %vm308, %v303, %v305
  %v311 = vsel %vm308, %v301, %v303
  %v312 = vsel %vm308, %v307, %v301
  %s313 = scalar_lea.vmem %s1, 128
  %v314 = vld [vmem:[%s313] sm:$0xff]
  %v315 = vld [vmem:[%s313 + $0x8] sm:$0xff]
  %v318 = vcombine.high %v314, %v314
  %v319 = vcombine.high %v315, %v315
  %v322 = vmul.f32 %v311, %v314
  %v323 = vmul.f32 %v310, %v318
  %v324 = vmul.f32 %v309, %v315
  %v325 = vmul.f32 %v312, %v319
  %326 = vst [vmem:[#allocation2 + $0x80] sm:$0xf] %v322
  %327 = vst [vmem:[#allocation2 + $0x88] sm:$0xf] %v323
  %328 = vst [vmem:[#allocation2 + $0x90] sm:$0xf] %v324
  %329 = vst [vmem:[#allocation2 + $0x98] sm:$0xf] %v325
  %v330 = vld [vmem:[%s2] sm:$0xf]
  %v331 = vld [vmem:[#allocation2] sm:$0xff]
  %v332 = vld [vmem:[#allocation2 + $0x8] sm:$0xff]
  %v333 = vld [vmem:[#allocation2 + $0x10] sm:$0xff]
  %v334 = vld [vmem:[#allocation2 + $0x18] sm:$0xff]
  %v335 = vld [vmem:[#allocation2 + $0x20] sm:$0xff]
  %v336 = vld [vmem:[#allocation2 + $0x28] sm:$0xff]
  %v337 = vld [vmem:[#allocation2 + $0x30] sm:$0xff]
  %v338 = vld [vmem:[#allocation2 + $0x38] sm:$0xff]
  %v339 = vld [vmem:[#allocation2 + $0x40] sm:$0xff]
  %v340 = vld [vmem:[#allocation2 + $0x48] sm:$0xff]
  %v341 = vld [vmem:[#allocation2 + $0x50] sm:$0xff]
  %v342 = vld [vmem:[#allocation2 + $0x58] sm:$0xff]
  %v343 = vld [vmem:[#allocation2 + $0x60] sm:$0xff]
  %v344 = vld [vmem:[#allocation2 + $0x68] sm:$0xff]
  %v345 = vld [vmem:[#allocation2 + $0x70] sm:$0xff]
  %v346 = vld [vmem:[#allocation2 + $0x78] sm:$0xff]
  %v347 = vld [vmem:[#allocation2 + $0x80] sm:$0xf]
  %v348 = vld [vmem:[#allocation2 + $0x88] sm:$0xf]
  %v349 = vld [vmem:[#allocation2 + $0x90] sm:$0xf]
  %v350 = vld [vmem:[#allocation2 + $0x98] sm:$0xf]
  %vm351 = vcmask 293888
  %v353 = vsel %vm351, %v330, 0
  %vm355 = vcmask 1043456
  %v357 = vsel %vm355, %v347, 0
  %v360 = vsel %vm355, %v348, 0
  %v363 = vsel %vm355, %v349, 0
  %v366 = vsel %vm355, %v350, 0
  %368 = vmatprep.subr.mxu0 %v332
  %369 = vmatpush1.msra.mxu0 %v331
  %370 = vmatprep.subr.mxu0 %v336
  %371 = vmatpush1.msra.mxu0 %v335
  %372 = vmatprep.subr.mxu0 %v340
  %373 = vmatpush1.msra.mxu0 %v339
  %374 = vmatprep.subr.mxu0 %v344
  %375 = vmatpush1.msra.mxu0 %v343
  %376 = vmatprep.subr.mxu0 %v360
  %377 = vmatpush1.msra.mxu0 %v357
  %378 = vmatprep.subr.mxu0 0.0
  %379 = vmatpush1.msra.mxu0 0.0
  %380 = vmatprep.subr.mxu0 0.0
  %381 = vmatpush1.msra.mxu0 0.0
  %382 = vmatprep.subr.mxu0 0.0
  %383 = vmatpush1.msra.mxu0 0.0
  %384 = vmatprep.subr.mxu0 0.0
  %385 = vmatpush1.msra.mxu0 0.0
  %386 = vmatprep.subr.mxu0 0.0
  %387 = vmatpush1.msra.mxu0 0.0
  %388 = vmatprep.subr.mxu0 0.0
  %389 = vmatpush1.msra.mxu0 0.0
  %390 = vmatprep.subr.mxu0 0.0
  %391 = vmatpush1.msra.mxu0 0.0
  %392 = vmatprep.subr.mxu0 0.0
  %393 = vmatpush1.msra.mxu0 0.0
  %394 = vmatprep.subr.mxu0 0.0
  %395 = vmatpush1.msra.mxu0 0.0
  %396 = vmatprep.subr.mxu0 0.0
  %397 = vmatpush1.msra.mxu0 0.0
  %398 = vmatprep.subr.mxu0 0.0
  %399 = vmatpush1.msra.mxu0 0.0
  %400 = vmatprep.subr.mxu0 0.0
  %401 = vmatpush1.msra.mxu0 0.0
  %402 = vmatprep.subr.mxu0 0.0
  %403 = vmatpush1.msra.mxu0 0.0
  %404 = vmatprep.subr.mxu0 0.0
  %405 = vmatpush1.msra.mxu0 0.0
  %406 = vmatprep.subr.mxu0 0.0
  %407 = vmatpush1.msra.mxu0 0.0
  %408 = vmatprep.subr.mxu0 0.0
  %409 = vmatpush1.msra.mxu0 0.0
  %410 = vmatprep.subr.mxu0 0.0
  %411 = vmatpush1.msra.mxu0 0.0
  %412 = vmatprep.subr.mxu0 0.0
  %413 = vmatpush1.msra.mxu0 0.0
  %414 = vmatprep.subr.mxu0 0.0
  %415 = vmatpush1.msra.mxu0 0.0
  %416 = vmatprep.subr.mxu0 0.0
  %417 = vmatpush1.msra.mxu0 0.0
  %418 = vmatprep.subr.mxu0 0.0
  %419 = vmatpush1.msra.mxu0 0.0
  %420 = vmatprep.subr.mxu0 0.0
  %421 = vmatpush1.msra.mxu0 0.0
  %422 = vmatprep.subr.mxu0 0.0
  %423 = vmatpush1.msra.mxu0 0.0
  %424 = vmatprep.subr.mxu0 0.0
  %425 = vmatpush1.msra.mxu0 0.0
  %426 = vmatprep.subr.mxu0 0.0
  %427 = vmatpush1.msra.mxu0 0.0
  %428 = vmatprep.subr.mxu0 0.0
  %429 = vmatpush1.msra.mxu0 0.0
  %430 = vmatprep.subr.mxu0 0.0
  %431 = vmatpush1.msra.mxu0 0.0
  %432 = vmatprep.mubr.f32.mxu0 0.0
  %433 = vmatmul.mubr.f32.gmra.mrb[0].mxu0 %v353
  %v434 = vpop.f32.mrb[0].mxu0
  %v435 = vadd.f32 0.0, %v434
  %v436 = vpop.f32.mrb[0].mxu0
  %v437 = vadd.f32 0.0, %v436
  %438 = vdwg.mxu0
  %439 = vmatprep.subr.mxu0 %v334
  %440 = vmatpush1.msra.mxu0 %v333
  %441 = vmatprep.subr.mxu0 %v338
  %442 = vmatpush1.msra.mxu0 %v337
  %443 = vmatprep.subr.mxu0 %v342
  %444 = vmatpush1.msra.mxu0 %v341
  %445 = vmatprep.subr.mxu0 %v346
  %446 = vmatpush1.msra.mxu0 %v345
  %447 = vmatprep.subr.mxu0 %v366
  %448 = vmatpush1.msra.mxu0 %v363
  %449 = vmatprep.subr.mxu0 0.0
  %450 = vmatpush1.msra.mxu0 0.0
  %451 = vmatprep.subr.mxu0 0.0
  %452 = vmatpush1.msra.mxu0 0.0
  %453 = vmatprep.subr.mxu0 0.0
  %454 = vmatpush1.msra.mxu0 0.0
  %455 = vmatprep.subr.mxu0 0.0
  %456 = vmatpush1.msra.mxu0 0.0
  %457 = vmatprep.subr.mxu0 0.0
  %458 = vmatpush1.msra.mxu0 0.0
  %459 = vmatprep.subr.mxu0 0.0
  %460 = vmatpush1.msra.mxu0 0.0
  %461 = vmatprep.subr.mxu0 0.0
  %462 = vmatpush1.msra.mxu0 0.0
  %463 = vmatprep.subr.mxu0 0.0
  %464 = vmatpush1.msra.mxu0 0.0
  %465 = vmatprep.subr.mxu0 0.0
  %466 = vmatpush1.msra.mxu0 0.0
  %467 = vmatprep.subr.mxu0 0.0
  %468 = vmatpush1.msra.mxu0 0.0
  %469 = vmatprep.subr.mxu0 0.0
  %470 = vmatpush1.msra.mxu0 0.0
  %471 = vmatprep.subr.mxu0 0.0
  %472 = vmatpush1.msra.mxu0 0.0
  %473 = vmatprep.subr.mxu0 0.0
  %474 = vmatpush1.msra.mxu0 0.0
  %475 = vmatprep.subr.mxu0 0.0
  %476 = vmatpush1.msra.mxu0 0.0
  %477 = vmatprep.subr.mxu0 0.0
  %478 = vmatpush1.msra.mxu0 0.0
  %479 = vmatprep.subr.mxu0 0.0
  %480 = vmatpush1.msra.mxu0 0.0
  %481 = vmatprep.subr.mxu0 0.0
  %482 = vmatpush1.msra.mxu0 0.0
  %483 = vmatprep.subr.mxu0 0.0
  %484 = vmatpush1.msra.mxu0 0.0
  %485 = vmatprep.subr.mxu0 0.0
  %486 = vmatpush1.msra.mxu0 0.0
  %487 = vmatprep.subr.mxu0 0.0
  %488 = vmatpush1.msra.mxu0 0.0
  %489 = vmatprep.subr.mxu0 0.0
  %490 = vmatpush1.msra.mxu0 0.0
  %491 = vmatprep.subr.mxu0 0.0
  %492 = vmatpush1.msra.mxu0 0.0
  %493 = vmatprep.subr.mxu0 0.0
  %494 = vmatpush1.msra.mxu0 0.0
  %495 = vmatprep.subr.mxu0 0.0
  %496 = vmatpush1.msra.mxu0 0.0
  %497 = vmatprep.subr.mxu0 0.0
  %498 = vmatpush1.msra.mxu0 0.0
  %499 = vmatprep.subr.mxu0 0.0
  %500 = vmatpush1.msra.mxu0 0.0
  %501 = vmatprep.subr.mxu0 0.0
  %502 = vmatpush1.msra.mxu0 0.0
  %503 = vmatprep.mubr.f32.mxu0 0.0
  %504 = vmatmul.mubr.f32.gmra.mrb[0].mxu0 %v353
  %v505 = vpop.f32.mrb[0].mxu0
  %v506 = vadd.f32 0.0, %v505
  %v507 = vpop.f32.mrb[0].mxu0
  %v508 = vadd.f32 0.0, %v507
  %509 = vdwg.mxu0
  %v510 = vsel %vm355, %v435, 0.0
  %v511 = vsel %vm355, %v437, 0.0
  %v512 = vadd.f32 %v510, %v511
  %v513 = vsel %vm355, %v506, 0.0
  %v514 = vadd.f32 %v512, %v513
  %v515 = vsel %vm355, %v508, 0.0
  %v516 = vadd.f32 %v514, %v515
  %517 = vadd.xlane.f32.xlu0 %v516
  %v518 = vpop.xlane.xlu0 %517
  %v519 = vmul.f32 %v518, 0.001953125
  %v520 = vsub.f32 %v435, %v519
  %v521 = vsub.f32 %v437, %v519
  %v522 = vsub.f32 %v506, %v519
  %v523 = vsub.f32 %v508, %v519
  %v524 = vmul.f32 %v520, %v520
  %v525 = vmul.f32 %v521, %v521
  %v526 = vmul.f32 %v522, %v522
  %v527 = vmul.f32 %v523, %v523
  %v528 = vsel %vm355, %v524, 0.0
  %v529 = vsel %vm355, %v525, 0.0
  %v530 = vadd.f32 %v528, %v529
  %v531 = vsel %vm355, %v526, 0.0
  %v532 = vadd.f32 %v530, %v531
  %v533 = vsel %vm355, %v527, 0.0
  %v534 = vadd.f32 %v532, %v533
  %535 = vadd.xlane.f32.xlu0 %v534
  %v536 = vpop.xlane.xlu0 %535
  %v537 = vmul.f32 %v536, 0.001953125
  %v538 = vld [vmem:[%s3] sm:$0xf]
  %v539 = vadd.f32 %v537, 1e-05
  %v540 = vrsqrt.pop %v539
  %v541 = vmul.f32 %v538, %v540
  %543 = vset.pattern.permute.xlu0 0
  %544 = vperm.xlu0 %543, %v541
  %v545 = vpop.permute.xlu0 %544
  %v547 = vmul.f32 %v520, %v545
  %v548 = vmul.f32 %v521, %v545
  %v549 = vmul.f32 %v522, %v545
  %v550 = vmul.f32 %v523, %v545
  %v551 = vld [vmem:[%s4] sm:$0xf]
  %553 = vset.pattern.permute.xlu0 0
  %554 = vperm.xlu0 %553, %v551
  %v555 = vpop.permute.xlu0 %554
  %v557 = vadd.f32 %v547, %v555
  %v558 = vadd.f32 %v548, %v555
  %v559 = vadd.f32 %v549, %v555
  %v560 = vadd.f32 %v550, %v555
  %vm561 = vcmp.gt.f32.partialorder %v557, 0.0
  %vm562 = vcmp.gt.f32.partialorder %v558, 0.0
  %vm563 = vcmp.gt.f32.partialorder %v559, 0.0
  %vm564 = vcmp.gt.f32.partialorder %v560, 0.0
  %v565 = vmul.f32 %v557, 0.01
  %v566 = vmul.f32 %v558, 0.01
  %v567 = vmul.f32 %v559, 0.01
  %v568 = vmul.f32 %v560, 0.01
  %v569 = vsel %vm561, %v557, %v565
  %v570 = vsel %vm562, %v558, %v566
  %v571 = vsel %vm563, %v559, %v567
  %v572 = vsel %vm564, %v560, %v568
  %573 = vrot.lane.b32.xlu0 %v569, 17
  %v574 = vpop.permute.xlu0 %573
  %575 = vrot.lane.b32.xlu0 %v570, 17
  %v576 = vpop.permute.xlu0 %575
  %577 = vrot.lane.b32.xlu0 %v571, 17
  %v578 = vpop.permute.xlu0 %577
  %579 = vrot.lane.b32.xlu0 %v572, 17
  %v580 = vpop.permute.xlu0 %579
  %v581 = vsel %vm47, %v578, %v580
  %v582 = vsel %vm47, %v576, %v578
  %v583 = vsel %vm47, %v574, %v576
  %v584 = vsel %vm47, %v580, %v574
  %v585 = vld [vmem:[%s1] sm:$0xff]
  %v586 = vld [vmem:[%s1 + $0x8] sm:$0xff]
  %v589 = vcombine.high %v585, %v585
  %v590 = vcombine.high %v586, %v586
  %v593 = vmul.f32 %v584, %v585
  %v594 = vmul.f32 %v583, %v589
  %v595 = vmul.f32 %v582, %v586
  %v596 = vmul.f32 %v581, %v590
  %597 = vst [vmem:[#allocation2] sm:$0xf] %v593
  %598 = vst [vmem:[#allocation2 + $0x8] sm:$0xf] %v594
  %599 = vst [vmem:[#allocation2 + $0x10] sm:$0xf] %v595
  %600 = vst [vmem:[#allocation2 + $0x18] sm:$0xf] %v596
  %601 = vrot.lane.b32.xlu0 %v569, 16
  %v602 = vpop.permute.xlu0 %601
  %603 = vrot.lane.b32.xlu0 %v570, 16
  %v604 = vpop.permute.xlu0 %603
  %605 = vrot.lane.b32.xlu0 %v571, 16
  %v606 = vpop.permute.xlu0 %605
  %607 = vrot.lane.b32.xlu0 %v572, 16
  %v608 = vpop.permute.xlu0 %607
  %v609 = vsel %vm76, %v606, %v608
  %v610 = vsel %vm76, %v604, %v606
  %v611 = vsel %vm76, %v602, %v604
  %v612 = vsel %vm76, %v608, %v602
  %v613 = vld [vmem:[%s81] sm:$0xff]
  %v614 = vld [vmem:[%s81 + $0x8] sm:$0xff]
  %v617 = vcombine.high %v613, %v613
  %v618 = vcombine.high %v614, %v614
  %v621 = vmul.f32 %v612, %v613
  %v622 = vmul.f32 %v611, %v617
  %v623 = vmul.f32 %v610, %v614
  %v624 = vmul.f32 %v609, %v618
  %v629 = vrot.slane %v621, 4
  %v630 = vrot.slane %v622, 4
  %v631 = vrot.slane %v623, 4
  %v632 = vrot.slane %v624, 4
  %637 = vst [vmem:[#allocation2] sm:$0xf0] %v629
  %638 = vst [vmem:[#allocation2 + $0x8] sm:$0xf0] %v630
  %639 = vst [vmem:[#allocation2 + $0x10] sm:$0xf0] %v631
  %640 = vst [vmem:[#allocation2 + $0x18] sm:$0xf0] %v632
  %641 = vrot.lane.b32.xlu0 %v569, 15
  %v642 = vpop.permute.xlu0 %641
  %643 = vrot.lane.b32.xlu0 %v570, 15
  %v644 = vpop.permute.xlu0 %643
  %645 = vrot.lane.b32.xlu0 %v571, 15
  %v646 = vpop.permute.xlu0 %645
  %647 = vrot.lane.b32.xlu0 %v572, 15
  %v648 = vpop.permute.xlu0 %647
  %v649 = vsel %vm118, %v646, %v648
  %v650 = vsel %vm118, %v644, %v646
  %v651 = vsel %vm118, %v642, %v644
  %v652 = vsel %vm118, %v648, %v642
  %v653 = vld [vmem:[%s123] sm:$0xff]
  %v654 = vld [vmem:[%s123 + $0x8] sm:$0xff]
  %v657 = vcombine.high %v653, %v653
  %v658 = vcombine.high %v654, %v654
  %v661 = vmul.f32 %v652, %v653
  %v662 = vmul.f32 %v651, %v657
  %v663 = vmul.f32 %v650, %v654
  %v664 = vmul.f32 %v649, %v658
  %665 = vst [vmem:[#allocation2 + $0x20] sm:$0xf] %v661
  %666 = vst [vmem:[#allocation2 + $0x28] sm:$0xf] %v662
  %667 = vst [vmem:[#allocation2 + $0x30] sm:$0xf] %v663
  %668 = vst [vmem:[#allocation2 + $0x38] sm:$0xf] %v664
  %669 = vrot.lane.b32.xlu0 %v569, 1
  %v670 = vpop.permute.xlu0 %669
  %671 = vrot.lane.b32.xlu0 %v570, 1
  %v672 = vpop.permute.xlu0 %671
  %673 = vrot.lane.b32.xlu0 %v571, 1
  %v674 = vpop.permute.xlu0 %673
  %675 = vrot.lane.b32.xlu0 %v572, 1
  %v676 = vpop.permute.xlu0 %675
  %v677 = vsel %vm148, %v674, %v676
  %v678 = vsel %vm148, %v672, %v674
  %v679 = vsel %vm148, %v670, %v672
  %v680 = vsel %vm148, %v676, %v670
  %v681 = vld [vmem:[%s153] sm:$0xff]
  %v682 = vld [vmem:[%s153 + $0x8] sm:$0xff]
  %v685 = vcombine.high %v681, %v681
  %v686 = vcombine.high %v682, %v682
  %v689 = vmul.f32 %v680, %v681
  %v690 = vmul.f32 %v679, %v685
  %v691 = vmul.f32 %v678, %v682
  %v692 = vmul.f32 %v677, %v686
  %v697 = vrot.slane %v689, 4
  %v698 = vrot.slane %v690, 4
  %v699 = vrot.slane %v691, 4
  %v700 = vrot.slane %v692, 4
  %705 = vst [vmem:[#allocation2 + $0x20] sm:$0xf0] %v697
  %706 = vst [vmem:[#allocation2 + $0x28] sm:$0xf0] %v698
  %707 = vst [vmem:[#allocation2 + $0x30] sm:$0xf0] %v699
  %708 = vst [vmem:[#allocation2 + $0x38] sm:$0xf0] %v700
  %709 = vst [vmem:[#allocation2 + $0x40] sm:$0xf] %v569
  %710 = vst [vmem:[#allocation2 + $0x48] sm:$0xf] %v570
  %711 = vst [vmem:[#allocation2 + $0x50] sm:$0xf] %v571
  %712 = vst [vmem:[#allocation2 + $0x58] sm:$0xf] %v572
  %713 = vrot.lane.b32.xlu0 %v569, 127
  %v714 = vpop.permute.xlu0 %713
  %715 = vrot.lane.b32.xlu0 %v570, 127
  %v716 = vpop.permute.xlu0 %715
  %717 = vrot.lane.b32.xlu0 %v571, 127
  %v718 = vpop.permute.xlu0 %717
  %719 = vrot.lane.b32.xlu0 %v572, 127
  %v720 = vpop.permute.xlu0 %719
  %v721 = vsel %vm194, %v718, %v720
  %v722 = vsel %vm194, %v716, %v718
  %v723 = vsel %vm194, %v714, %v716
  %v724 = vsel %vm194, %v720, %v714
  %v725 = vld [vmem:[%s199] sm:$0xff]
  %v726 = vld [vmem:[%s199 + $0x8] sm:$0xff]
  %v729 = vcombine.high %v725, %v725
  %v730 = vcombine.high %v726, %v726
  %v733 = vmul.f32 %v723, %v725
  %v734 = vmul.f32 %v722, %v729
  %v735 = vmul.f32 %v721, %v726
  %v736 = vmul.f32 %v724, %v730
  %v741 = vrot.slane %v733, 4
  %v742 = vrot.slane %v734, 4
  %v743 = vrot.slane %v735, 4
  %v744 = vrot.slane %v736, 4
  %749 = vst [vmem:[#allocation2 + $0x40] sm:$0xf0] %v741
  %750 = vst [vmem:[#allocation2 + $0x48] sm:$0xf0] %v742
  %751 = vst [vmem:[#allocation2 + $0x50] sm:$0xf0] %v743
  %752 = vst [vmem:[#allocation2 + $0x58] sm:$0xf0] %v744
  %753 = vrot.lane.b32.xlu0 %v569, 113
  %v754 = vpop.permute.xlu0 %753
  %755 = vrot.lane.b32.xlu0 %v570, 113
  %v756 = vpop.permute.xlu0 %755
  %757 = vrot.lane.b32.xlu0 %v571, 113
  %v758 = vpop.permute.xlu0 %757
  %759 = vrot.lane.b32.xlu0 %v572, 113
  %v760 = vpop.permute.xlu0 %759
  %v761 = vsel %vm236, %v758, %v760
  %v762 = vsel %vm236, %v756, %v758
  %v763 = vsel %vm236, %v754, %v756
  %v764 = vsel %vm236, %v760, %v754
  %v765 = vld [vmem:[%s241] sm:$0xff]
  %v766 = vld [vmem:[%s241 + $0x8] sm:$0xff]
  %v769 = vcombine.high %v765, %v765
  %v770 = vcombine.high %v766, %v766
  %v773 = vmul.f32 %v763, %v765
  %v774 = vmul.f32 %v762, %v769
  %v775 = vmul.f32 %v761, %v766
  %v776 = vmul.f32 %v764, %v770
  %777 = vst [vmem:[#allocation2 + $0x60] sm:$0xf] %v773
  %778 = vst [vmem:[#allocation2 + $0x68] sm:$0xf] %v774
  %779 = vst [vmem:[#allocation2 + $0x70] sm:$0xf] %v775
  %780 = vst [vmem:[#allocation2 + $0x78] sm:$0xf] %v776
  %781 = vrot.lane.b32.xlu0 %v569, 112
  %v782 = vpop.permute.xlu0 %781
  %783 = vrot.lane.b32.xlu0 %v570, 112
  %v784 = vpop.permute.xlu0 %783
  %785 = vrot.lane.b32.xlu0 %v571, 112
  %v786 = vpop.permute.xlu0 %785
  %787 = vrot.lane.b32.xlu0 %v572, 112
  %v788 = vpop.permute.xlu0 %787
  %v789 = vsel %vm266, %v786, %v788
  %v790 = vsel %vm266, %v784, %v786
  %v791 = vsel %vm266, %v782, %v784
  %v792 = vsel %vm266, %v788, %v782
  %v793 = vld [vmem:[%s271] sm:$0xff]
  %v794 = vld [vmem:[%s271 + $0x8] sm:$0xff]
  %v797 = vcombine.high %v793, %v793
  %v798 = vcombine.high %v794, %v794
  %v801 = vmul.f32 %v791, %v793
  %v802 = vmul.f32 %v790, %v797
  %v803 = vmul.f32 %v789, %v794
  %v804 = vmul.f32 %v792, %v798
  %v809 = vrot.slane %v801, 4
  %v810 = vrot.slane %v802, 4
  %v811 = vrot.slane %v803, 4
  %v812 = vrot.slane %v804, 4
  %817 = vst [vmem:[#allocation2 + $0x60] sm:$0xf0] %v809
  %818 = vst [vmem:[#allocation2 + $0x68] sm:$0xf0] %v810
  %819 = vst [vmem:[#allocation2 + $0x70] sm:$0xf0] %v811
  %820 = vst [vmem:[#allocation2 + $0x78] sm:$0xf0] %v812
  %821 = vrot.lane.b32.xlu0 %v569, 111
  %v822 = vpop.permute.xlu0 %821
  %823 = vrot.lane.b32.xlu0 %v570, 111
  %v824 = vpop.permute.xlu0 %823
  %825 = vrot.lane.b32.xlu0 %v571, 111
  %v826 = vpop.permute.xlu0 %825
  %827 = vrot.lane.b32.xlu0 %v572, 111
  %v828 = vpop.permute.xlu0 %827
  %v829 = vsel %vm308, %v826, %v828
  %v830 = vsel %vm308, %v824, %v826
  %v831 = vsel %vm308, %v822, %v824
  %v832 = vsel %vm308, %v828, %v822
  %v833 = vld [vmem:[%s313] sm:$0xff]
  %v834 = vld [vmem:[%s313 + $0x8] sm:$0xff]
  %v837 = vcombine.high %v833, %v833
  %v838 = vcombine.high %v834, %v834
  %v841 = vmul.f32 %v831, %v833
  %v842 = vmul.f32 %v830, %v837
  %v843 = vmul.f32 %v829, %v834
  %v844 = vmul.f32 %v832, %v838
  %845 = vst [vmem:[#allocation2 + $0x80] sm:$0xf] %v841
  %846 = vst [vmem:[#allocation2 + $0x88] sm:$0xf] %v842
  %847 = vst [vmem:[#allocation2 + $0x90] sm:$0xf] %v843
  %848 = vst [vmem:[#allocation2 + $0x98] sm:$0xf] %v844
  %v849 = vld [vmem:[%s5] sm:$0xf]
  %v850 = vld [vmem:[#allocation2] sm:$0xff]
  %v851 = vld [vmem:[#allocation2 + $0x8] sm:$0xff]
  %v852 = vld [vmem:[#allocation2 + $0x10] sm:$0xff]
  %v853 = vld [vmem:[#allocation2 + $0x18] sm:$0xff]
  %v854 = vld [vmem:[#allocation2 + $0x20] sm:$0xff]
  %v855 = vld [vmem:[#allocation2 + $0x28] sm:$0xff]
  %v856 = vld [vmem:[#allocation2 + $0x30] sm:$0xff]
  %v857 = vld [vmem:[#allocation2 + $0x38] sm:$0xff]
  %v858 = vld [vmem:[#allocation2 + $0x40] sm:$0xff]
  %v859 = vld [vmem:[#allocation2 + $0x48] sm:$0xff]
  %v860 = vld [vmem:[#allocation2 + $0x50] sm:$0xff]
  %v861 = vld [vmem:[#allocation2 + $0x58] sm:$0xff]
  %v862 = vld [vmem:[#allocation2 + $0x60] sm:$0xff]
  %v863 = vld [vmem:[#allocation2 + $0x68] sm:$0xff]
  %v864 = vld [vmem:[#allocation2 + $0x70] sm:$0xff]
  %v865 = vld [vmem:[#allocation2 + $0x78] sm:$0xff]
  %v866 = vld [vmem:[#allocation2 + $0x80] sm:$0xf]
  %v867 = vld [vmem:[#allocation2 + $0x88] sm:$0xf]
  %v868 = vld [vmem:[#allocation2 + $0x90] sm:$0xf]
  %v869 = vld [vmem:[#allocation2 + $0x98] sm:$0xf]
  %v871 = vsel %vm351, %v849, 0
  %v874 = vsel %vm355, %v866, 0
  %v877 = vsel %vm355, %v867, 0
  %v880 = vsel %vm355, %v868, 0
  %v883 = vsel %vm355, %v869, 0
  %885 = vmatprep.subr.mxu0 %v851
  %886 = vmatpush1.msra.mxu0 %v850
  %887 = vmatprep.subr.mxu0 %v855
  %888 = vmatpush1.msra.mxu0 %v854
  %889 = vmatprep.subr.mxu0 %v859
  %890 = vmatpush1.msra.mxu0 %v858
  %891 = vmatprep.subr.mxu0 %v863
  %892 = vmatpush1.msra.mxu0 %v862
  %893 = vmatprep.subr.mxu0 %v877
  %894 = vmatpush1.msra.mxu0 %v874
  %895 = vmatprep.subr.mxu0 0.0
  %896 = vmatpush1.msra.mxu0 0.0
  %897 = vmatprep.subr.mxu0 0.0
  %898 = vmatpush1.msra.mxu0 0.0
  %899 = vmatprep.subr.mxu0 0.0
  %900 = vmatpush1.msra.mxu0 0.0
  %901 = vmatprep.subr.mxu0 0.0
  %902 = vmatpush1.msra.mxu0 0.0
  %903 = vmatprep.subr.mxu0 0.0
  %904 = vmatpush1.msra.mxu0 0.0
  %905 = vmatprep.subr.mxu0 0.0
  %906 = vmatpush1.msra.mxu0 0.0
  %907 = vmatprep.subr.mxu0 0.0
  %908 = vmatpush1.msra.mxu0 0.0
  %909 = vmatprep.subr.mxu0 0.0
  %910 = vmatpush1.msra.mxu0 0.0
  %911 = vmatprep.subr.mxu0 0.0
  %912 = vmatpush1.msra.mxu0 0.0
  %913 = vmatprep.subr.mxu0 0.0
  %914 = vmatpush1.msra.mxu0 0.0
  %915 = vmatprep.subr.mxu0 0.0
  %916 = vmatpush1.msra.mxu0 0.0
  %917 = vmatprep.subr.mxu0 0.0
  %918 = vmatpush1.msra.mxu0 0.0
  %919 = vmatprep.subr.mxu0 0.0
  %920 = vmatpush1.msra.mxu0 0.0
  %921 = vmatprep.subr.mxu0 0.0
  %922 = vmatpush1.msra.mxu0 0.0
  %923 = vmatprep.subr.mxu0 0.0
  %924 = vmatpush1.msra.mxu0 0.0
  %925 = vmatprep.subr.mxu0 0.0
  %926 = vmatpush1.msra.mxu0 0.0
  %927 = vmatprep.subr.mxu0 0.0
  %928 = vmatpush1.msra.mxu0 0.0
  %929 = vmatprep.subr.mxu0 0.0
  %930 = vmatpush1.msra.mxu0 0.0
  %931 = vmatprep.subr.mxu0 0.0
  %932 = vmatpush1.msra.mxu0 0.0
  %933 = vmatprep.subr.mxu0 0.0
  %934 = vmatpush1.msra.mxu0 0.0
  %935 = vmatprep.subr.mxu0 0.0
  %936 = vmatpush1.msra.mxu0 0.0
  %937 = vmatprep.subr.mxu0 0.0
  %938 = vmatpush1.msra.mxu0 0.0
  %939 = vmatprep.subr.mxu0 0.0
  %940 = vmatpush1.msra.mxu0 0.0
  %941 = vmatprep.subr.mxu0 0.0
  %942 = vmatpush1.msra.mxu0 0.0
  %943 = vmatprep.subr.mxu0 0.0
  %944 = vmatpush1.msra.mxu0 0.0
  %945 = vmatprep.subr.mxu0 0.0
  %946 = vmatpush1.msra.mxu0 0.0
  %947 = vmatprep.subr.mxu0 0.0
  %948 = vmatpush1.msra.mxu0 0.0
  %949 = vmatprep.mubr.f32.mxu0 0.0
  %950 = vmatmul.mubr.f32.gmra.mrb[0].mxu0 %v871
  %v951 = vpop.f32.mrb[0].mxu0
  %v952 = vadd.f32 0.0, %v951
  %v953 = vpop.f32.mrb[0].mxu0
  %v954 = vadd.f32 0.0, %v953
  %955 = vdwg.mxu0
  %956 = vmatprep.subr.mxu0 %v853
  %957 = vmatpush1.msra.mxu0 %v852
  %958 = vmatprep.subr.mxu0 %v857
  %959 = vmatpush1.msra.mxu0 %v856
  %960 = vmatprep.subr.mxu0 %v861
  %961 = vmatpush1.msra.mxu0 %v860
  %962 = vmatprep.subr.mxu0 %v865
  %963 = vmatpush1.msra.mxu0 %v864
  %964 = vmatprep.subr.mxu0 %v883
  %965 = vmatpush1.msra.mxu0 %v880
  %966 = vmatprep.subr.mxu0 0.0
  %967 = vmatpush1.msra.mxu0 0.0
  %968 = vmatprep.subr.mxu0 0.0
  %969 = vmatpush1.msra.mxu0 0.0
  %970 = vmatprep.subr.mxu0 0.0
  %971 = vmatpush1.msra.mxu0 0.0
  %972 = vmatprep.subr.mxu0 0.0
  %973 = vmatpush1.msra.mxu0 0.0
  %974 = vmatprep.subr.mxu0 0.0
  %975 = vmatpush1.msra.mxu0 0.0
  %976 = vmatprep.subr.mxu0 0.0
  %977 = vmatpush1.msra.mxu0 0.0
  %978 = vmatprep.subr.mxu0 0.0
  %979 = vmatpush1.msra.mxu0 0.0
  %980 = vmatprep.subr.mxu0 0.0
  %981 = vmatpush1.msra.mxu0 0.0
  %982 = vmatprep.subr.mxu0 0.0
  %983 = vmatpush1.msra.mxu0 0.0
  %984 = vmatprep.subr.mxu0 0.0
  %985 = vmatpush1.msra.mxu0 0.0
  %986 = vmatprep.subr.mxu0 0.0
  %987 = vmatpush1.msra.mxu0 0.0
  %988 = vmatprep.subr.mxu0 0.0
  %989 = vmatpush1.msra.mxu0 0.0
  %990 = vmatprep.subr.mxu0 0.0
  %991 = vmatpush1.msra.mxu0 0.0
  %992 = vmatprep.subr.mxu0 0.0
  %993 = vmatpush1.msra.mxu0 0.0
  %994 = vmatprep.subr.mxu0 0.0
  %995 = vmatpush1.msra.mxu0 0.0
  %996 = vmatprep.subr.mxu0 0.0
  %997 = vmatpush1.msra.mxu0 0.0
  %998 = vmatprep.subr.mxu0 0.0
  %999 = vmatpush1.msra.mxu0 0.0
  %1000 = vmatprep.subr.mxu0 0.0
  %1001 = vmatpush1.msra.mxu0 0.0
  %1002 = vmatprep.subr.mxu0 0.0
  %1003 = vmatpush1.msra.mxu0 0.0
  %1004 = vmatprep.subr.mxu0 0.0
  %1005 = vmatpush1.msra.mxu0 0.0
  %1006 = vmatprep.subr.mxu0 0.0
  %1007 = vmatpush1.msra.mxu0 0.0
  %1008 = vmatprep.subr.mxu0 0.0
  %1009 = vmatpush1.msra.mxu0 0.0
  %1010 = vmatprep.subr.mxu0 0.0
  %1011 = vmatpush1.msra.mxu0 0.0
  %1012 = vmatprep.subr.mxu0 0.0
  %1013 = vmatpush1.msra.mxu0 0.0
  %1014 = vmatprep.subr.mxu0 0.0
  %1015 = vmatpush1.msra.mxu0 0.0
  %1016 = vmatprep.subr.mxu0 0.0
  %1017 = vmatpush1.msra.mxu0 0.0
  %1018 = vmatprep.subr.mxu0 0.0
  %1019 = vmatpush1.msra.mxu0 0.0
  %1020 = vmatprep.mubr.f32.mxu0 0.0
  %1021 = vmatmul.mubr.f32.gmra.mrb[0].mxu0 %v871
  %v1022 = vpop.f32.mrb[0].mxu0
  %v1023 = vadd.f32 0.0, %v1022
  %v1024 = vpop.f32.mrb[0].mxu0
  %v1025 = vadd.f32 0.0, %v1024
  %1026 = vdwg.mxu0
  %v1027 = vsel %vm355, %v952, 0.0
  %v1028 = vsel %vm355, %v954, 0.0
  %v1029 = vadd.f32 %v1027, %v1028
  %v1030 = vsel %vm355, %v1023, 0.0
  %v1031 = vadd.f32 %v1029, %v1030
  %v1032 = vsel %vm355, %v1025, 0.0
  %v1033 = vadd.f32 %v1031, %v1032
  %1034 = vadd.xlane.f32.xlu0 %v1033
  %v1035 = vpop.xlane.xlu0 %1034
  %v1036 = vmul.f32 %v1035, 0.001953125
  %v1037 = vsub.f32 %v952, %v1036
  %v1038 = vsub.f32 %v954, %v1036
  %v1039 = vsub.f32 %v1023, %v1036
  %v1040 = vsub.f32 %v1025, %v1036
  %v1041 = vmul.f32 %v1037, %v1037
  %v1042 = vmul.f32 %v1038, %v1038
  %v1043 = vmul.f32 %v1039, %v1039
  %v1044 = vmul.f32 %v1040, %v1040
  %v1045 = vsel %vm355, %v1041, 0.0
  %v1046 = vsel %vm355, %v1042, 0.0
  %v1047 = vadd.f32 %v1045, %v1046
  %v1048 = vsel %vm355, %v1043, 0.0
  %v1049 = vadd.f32 %v1047, %v1048
  %v1050 = vsel %vm355, %v1044, 0.0
  %v1051 = vadd.f32 %v1049, %v1050
  %1052 = vadd.xlane.f32.xlu0 %v1051
  %v1053 = vpop.xlane.xlu0 %1052
  %v1054 = vmul.f32 %v1053, 0.001953125
  %v1055 = vld [vmem:[%s6] sm:$0xf]
  %v1056 = vadd.f32 %v1054, 1e-05
  %v1057 = vrsqrt.pop %v1056
  %v1058 = vmul.f32 %v1055, %v1057
  %1060 = vset.pattern.permute.xlu0 0
  %1061 = vperm.xlu0 %1060, %v1058
  %v1062 = vpop.permute.xlu0 %1061
  %v1064 = vmul.f32 %v1037, %v1062
  %v1065 = vmul.f32 %v1038, %v1062
  %v1066 = vmul.f32 %v1039, %v1062
  %v1067 = vmul.f32 %v1040, %v1062
  %v1068 = vld [vmem:[%s7] sm:$0xf]
  %1070 = vset.pattern.permute.xlu0 0
  %1071 = vperm.xlu0 %1070, %v1068
  %v1072 = vpop.permute.xlu0 %1071
  %v1074 = vadd.f32 %v1064, %v1072
  %v1075 = vadd.f32 %v1065, %v1072
  %v1076 = vadd.f32 %v1066, %v1072
  %v1077 = vadd.f32 %v1067, %v1072
  %vm1078 = vcmp.gt.f32.partialorder %v1074, 0.0
  %vm1079 = vcmp.gt.f32.partialorder %v1075, 0.0
  %vm1080 = vcmp.gt.f32.partialorder %v1076, 0.0
  %vm1081 = vcmp.gt.f32.partialorder %v1077, 0.0
  %v1082 = vmul.f32 %v1074, 0.01
  %v1083 = vmul.f32 %v1075, 0.01
  %v1084 = vmul.f32 %v1076, 0.01
  %v1085 = vmul.f32 %v1077, 0.01
  %v1086 = vsel %vm1078, %v1074, %v1082
  %v1087 = vsel %vm1079, %v1075, %v1083
  %v1088 = vsel %vm1080, %v1076, %v1084
  %v1089 = vsel %vm1081, %v1077, %v1085
  %v1090 = vadd.f32 %v1086, %v29
  %v1091 = vadd.f32 %v1087, %v33
  %v1092 = vadd.f32 %v1088, %v30
  %v1093 = vadd.f32 %v1089, %v34
  %v1098 = vcombine.low %v1090, %v1091
  %v1099 = vcombine.low %v1092, %v1093
  %1102 = vst [vmem:[%s8] sm:$0xff] %v1098
  %1103 = vst [vmem:[%s8 + $0x8] sm:$0xff] %v1099
  // Predicated region
  $region34: #{residual_block_nchw.1} parent=0 // pred_check
    _
  $region35: #{residual_block_nchw.1} parent=0 // pred_check_branch
    %1105 = sbr.rel (0) target = $region37
  $region36: #{residual_block_nchw.1} parent=0 // pred_region
    _
  $region37: #{residual_block_nchw.1} parent=0 // pred_fallthru
    _
  // Predicated region
  $region38: #{residual_block_nchw.1} parent=0 // pred_check
    _
  $region39: #{residual_block_nchw.1} parent=0 // pred_check_branch
    %1107 = sbr.rel (0) target = $region41
  $region40: #{residual_block_nchw.1} parent=0 // pred_region
    _
  $region41: #{residual_block_nchw.1} parent=0 // pred_fallthru
    _

</llo_original>
